<compile_context>
chip_gen: v6e
topology: v6e:2x2x1
jax: 0.10.0
libtpu: 0.0.40
codegen_flags: <defaults>
</compile_context>

<pallas_src>
import functools

import jax
import jax.numpy as jnp
from jax.experimental import pallas as pl
from jax.experimental.pallas import tpu as pltpu

INPUT_SIZE = 420       # 60 * 7
HIDDEN = 256
OUTPUT_SIZE = 3
PADDED_OUT = 128       # lane-dense output slab width
AGENT_TYPE = "fvg"
_TB = 256              # batch tile (multiple of 256 -> fully packed MXU on v6e/v7x)
_NEG_BIG = -1e30       # "minus infinity" for the padded logit columns


# ---------------------------------------------------------------------------
# Kernel
# ---------------------------------------------------------------------------
def _tactical_kernel(x_ref,
                     w1_ref, b1_ref,
                     w2_ref, b2_ref,
                     w3_ref, b3_ref,
                     w4_ref, b4_ref,
                     o_ref):
    # x is already bf16 and already feature-weighted via the folded w1.
    x = x_ref[...]                                                   # (TB, 420) bf16

    # feature_extractor: Linear(420->256) + ReLU   (Dropout = identity)
    h1 = jnp.dot(x, w1_ref[...], preferred_element_type=jnp.float32) + b1_ref[...]
    h1 = jnp.maximum(h1, 0.0)

    # Linear(256->128) + ReLU
    h2 = jnp.dot(h1.astype(jnp.bfloat16), w2_ref[...],
                 preferred_element_type=jnp.float32) + b2_ref[...]
    h2 = jnp.maximum(h2, 0.0)

    # decision_head: Linear(128->64) + ReLU
    h3 = jnp.dot(h2.astype(jnp.bfloat16), w3_ref[...],
                 preferred_element_type=jnp.float32) + b3_ref[...]
    h3 = jnp.maximum(h3, 0.0)

    # Linear(64->3) padded to 64->128; padded columns get -1e30 bias -> exp()==0.
    logits = jnp.dot(h3.astype(jnp.bfloat16), w4_ref[...],
                     preferred_element_type=jnp.float32) + b4_ref[...]  # (TB, 128)

    # Softmax(dim=-1) over the 128-wide slab (padded cols contribute 0).
    m = jnp.max(logits, axis=-1, keepdims=True)
    e = jnp.exp(logits - m)
    denom = jnp.sum(e, axis=-1, keepdims=True)
    o_ref[...] = e * pl.reciprocal(denom, approx=True)


# ---------------------------------------------------------------------------
# Parameter construction (matches PyTorch init semantics)
# ---------------------------------------------------------------------------
def _make_feature_weights(agent_type: str) -> jnp.ndarray:
    fw = jnp.ones((INPUT_SIZE,), dtype=jnp.float32)
    if agent_type == "fvg":
        fw = fw.at[: 60 * 2].multiply(2.0)
    elif agent_type == "momentum":
        fw = fw.at[60 * 5: 60 * 6].multiply(3.0)
    else:
        fw = fw.at[60 * 4: 60 * 5].multiply(2.0)
    return fw


def _kaiming_normal_fan_out(key, in_features, out_features):
    # PyTorch kaiming_normal_(mode='fan_out', nonlinearity='relu') on a Linear
    # weight of shape (out, in): std = sqrt(2 / fan_out) = sqrt(2 / out).
    # We store weights as (in, out) so the kernel computes x @ W.
    std = (2.0 / out_features) ** 0.5
    return std * jax.random.normal(key, (in_features, out_features), dtype=jnp.float32)


def init_params(seed: int = 0):
    """Returns (kernel_params, raw_f32_params).

    kernel_params: bf16 weights, fw folded into w1, w4/b4 padded to 128 cols.
    raw_f32_params: unmodified f32 tensors for the PyTorch-semantics reference.
    """
    key = jax.random.PRNGKey(seed)
    k1, k2, k3, k4 = jax.random.split(key, 4)

    fw = _make_feature_weights(AGENT_TYPE)                       # (420,)
    w1 = _kaiming_normal_fan_out(k1, INPUT_SIZE, HIDDEN)
    w2 = _kaiming_normal_fan_out(k2, HIDDEN, HIDDEN // 2)
    w3 = _kaiming_normal_fan_out(k3, HIDDEN // 2, HIDDEN // 4)
    w4 = _kaiming_normal_fan_out(k4, HIDDEN // 4, OUTPUT_SIZE)
    b1 = jnp.zeros((1, HIDDEN), dtype=jnp.float32)
    b2 = jnp.zeros((1, HIDDEN // 2), dtype=jnp.float32)
    b3 = jnp.zeros((1, HIDDEN // 4), dtype=jnp.float32)
    b4 = jnp.zeros((1, OUTPUT_SIZE), dtype=jnp.float32)

    raw = {"fw": fw, "w1": w1, "b1": b1, "w2": w2, "b2": b2,
           "w3": w3, "b3": b3, "w4": w4, "b4": b4}

    # Fold feature weights into w1:  (x * fw) @ W1 == x @ (diag(fw) @ W1).
    w1_eff = (fw[:, None] * w1).astype(jnp.bfloat16)

    # Pad w4/b4 to a lane-dense 128-wide output slab.
    w4_pad = jnp.zeros((HIDDEN // 4, PADDED_OUT), dtype=jnp.float32)
    w4_pad = w4_pad.at[:, :OUTPUT_SIZE].set(w4)
    b4_pad = jnp.full((1, PADDED_OUT), _NEG_BIG, dtype=jnp.float32)
    b4_pad = b4_pad.at[:, :OUTPUT_SIZE].set(b4)

    params = {
        "w1": w1_eff,
        "b1": b1,
        "w2": w2.astype(jnp.bfloat16),
        "b2": b2,
        "w3": w3.astype(jnp.bfloat16),
        "b3": b3,
        "w4": w4_pad.astype(jnp.bfloat16),
        "b4": b4_pad,
    }
    return params, raw


# ---------------------------------------------------------------------------
# Forward wrapper
# ---------------------------------------------------------------------------
@jax.jit
def tactical_agent_forward(x, params):
    """x: (B, 60, 7) or (60, 7) float32 -> (B, 3) or (3,) action probabilities."""
    original_rank = x.ndim
    if original_rank == 2:
        x = x[None, ...]
    batch = x.shape[0]

    # Row-major flatten (same as torch .view(B, -1)); bf16 to halve input DMA.
    x_flat = x.reshape(batch, -1).astype(jnp.bfloat16)           # (B, 420)

    # Batch tile: 256 for big batches, rounded-up-to-8 for tiny ones.
    tb = _TB if batch >= _TB else ((batch + 7) // 8) * 8
    num_blocks = pl.cdiv(batch, tb)
    b_pad = num_blocks * tb
    if b_pad != batch:
        x_flat = jnp.pad(x_flat, ((0, b_pad - batch), (0, 0)))

    # x / out tiles move with the grid; weights & biases are VMEM-resident
    # (constant block index across all grid steps).
    def _resident(shape):
        return pl.BlockSpec(shape, lambda i: tuple(0 for _ in shape))

    probs_pad = pl.pallas_call(
        _tactical_kernel,
        out_shape=jax.ShapeDtypeStruct((b_pad, PADDED_OUT), jnp.float32),
        grid=(num_blocks,),
        in_specs=[
            pl.BlockSpec((tb, INPUT_SIZE), lambda i: (i, 0)),     # x tile
            _resident((INPUT_SIZE, HIDDEN)),                      # w1 (fw folded)
            _resident((1, HIDDEN)),                               # b1
            _resident((HIDDEN, HIDDEN // 2)),                     # w2
            _resident((1, HIDDEN // 2)),                          # b2
            _resident((HIDDEN // 2, HIDDEN // 4)),                # w3
            _resident((1, HIDDEN // 4)),                          # b3
            _resident((HIDDEN // 4, PADDED_OUT)),                 # w4 (padded)
            _resident((1, PADDED_OUT)),                           # b4 (padded)
        ],
        out_specs=pl.BlockSpec((tb, PADDED_OUT), lambda i: (i, 0)),
        compiler_params=pltpu.CompilerParams(
            dimension_semantics=("parallel",)),                   # megacore on v7x
    )(
        x_flat,
        params["w1"], params["b1"],
        params["w2"], params["b2"],
        params["w3"], params["b3"],
        params["w4"], params["b4"],
    )

    probs = probs_pad[:batch, :OUTPUT_SIZE]
    if original_rank == 2:
        probs = probs[0]
    return probs


# ---------------------------------------------------------------------------
# References for self-checking
# ---------------------------------------------------------------------------
def _reference_bf16(x, params):
    """Mirrors the kernel's bf16-at-dot numerics (tight comparison)."""
    if x.ndim == 2:
        x = x[None, ...]
    b = x.shape[0]
    h = x.reshape(b, -1).astype(jnp.bfloat16)
    h1 = jnp.maximum(jnp.dot(h, params["w1"], preferred_element_type=jnp.float32)
                     + params["b1"], 0.0)
    h2 = jnp.maximum(jnp.dot(h1.astype(jnp.bfloat16), params["w2"],
                             preferred_element_type=jnp.float32) + params["b2"], 0.0)
    h3 = jnp.maximum(jnp.dot(h2.astype(jnp.bfloat16), params["w3"],
                             preferred_element_type=jnp.float32) + params["b3"], 0.0)
    logits = jnp.dot(h3.astype(jnp.bfloat16), params["w4"],
                     preferred_element_type=jnp.float32) + params["b4"]
    return jax.nn.softmax(logits, axis=-1)[:, :OUTPUT_SIZE]


def _reference_f32(x, raw):
    """Pure-f32 PyTorch-semantics reference (loose comparison vs bf16 kernel)."""
    if x.ndim == 2:
        x = x[None, ...]
    b = x.shape[0]
    h = x.reshape(b, -1) * raw["fw"]
    h = jnp.maximum(h @ raw["w1"] + raw["b1"], 0.0)
    h = jnp.maximum(h @ raw["w2"] + raw["b2"], 0.0)
    h = jnp.maximum(h @ raw["w3"] + raw["b3"], 0.0)
    return jax.nn.softmax(h @ raw["w4"] + raw["b4"], axis=-1)


# ---------------------------------------------------------------------------
if __name__ == "__main__":
    params, raw = init_params(seed=0)

    key = jax.random.PRNGKey(0)
    x = jax.random.normal(key, (2, 60, 7), dtype=jnp.float32)     # batch=2, (60, 7) bars

    probs = tactical_agent_forward(x, params)
    probs = jax.block_until_ready(probs)

    assert probs.shape == (2, OUTPUT_SIZE), probs.shape
    # Rows sum to 1 (approx reciprocal -> allow a little slack).
    assert jnp.allclose(jnp.sum(probs, axis=-1), 1.0, atol=5e-3)
    # Tight check vs a reference that matches the kernel's bf16-at-dot numerics.
    ref_bf16 = _reference_bf16(x, params)
    assert jnp.allclose(probs, ref_bf16, atol=2e-3, rtol=2e-3), (probs, ref_bf16)
    # Loose check vs the full-f32 PyTorch-semantics reference.
    ref_f32 = _reference_f32(x, raw)
    assert jnp.allclose(probs, ref_f32, atol=5e-2), (probs, ref_f32)

    print("KERNEL_OK")
</pallas_src>

<mosaic_0001>
module attributes {stable_mosaic.version = 11 : i64} {
  func.func @_tactical_kernel(%arg0: i32, %arg1: memref<8x420xbf16, #tpu.memory_space<vmem>>, %arg2: memref<420x256xbf16, #tpu.memory_space<vmem>>, %arg3: memref<1x256xf32, #tpu.memory_space<vmem>>, %arg4: memref<256x128xbf16, #tpu.memory_space<vmem>>, %arg5: memref<1x128xf32, #tpu.memory_space<vmem>>, %arg6: memref<128x64xbf16, #tpu.memory_space<vmem>>, %arg7: memref<1x64xf32, #tpu.memory_space<vmem>>, %arg8: memref<64x128xbf16, #tpu.memory_space<vmem>>, %arg9: memref<1x128xf32, #tpu.memory_space<vmem>>, %arg10: memref<8x128xf32, #tpu.memory_space<vmem>>) attributes {dimension_semantics = [#tpu.dimension_semantics<parallel>], iteration_bounds = array<i64: 1>, scalar_prefetch = 0 : i64, scratch_operands = 0 : i64, tpu.core_type = #tpu.core_type<tc>, window_params = [{transform_indices = @transform_0, window_bounds = array<i64: 8, 420>}, {pipeline_mode = #tpu.pipeline_mode<synchronous>, transform_indices = @transform_1, window_bounds = array<i64: 420, 256>}, {pipeline_mode = #tpu.pipeline_mode<synchronous>, transform_indices = @transform_2, window_bounds = array<i64: 1, 256>}, {pipeline_mode = #tpu.pipeline_mode<synchronous>, transform_indices = @transform_3, window_bounds = array<i64: 256, 128>}, {pipeline_mode = #tpu.pipeline_mode<synchronous>, transform_indices = @transform_4, window_bounds = array<i64: 1, 128>}, {pipeline_mode = #tpu.pipeline_mode<synchronous>, transform_indices = @transform_5, window_bounds = array<i64: 128, 64>}, {pipeline_mode = #tpu.pipeline_mode<synchronous>, transform_indices = @transform_6, window_bounds = array<i64: 1, 64>}, {pipeline_mode = #tpu.pipeline_mode<synchronous>, transform_indices = @transform_7, window_bounds = array<i64: 64, 128>}, {pipeline_mode = #tpu.pipeline_mode<synchronous>, transform_indices = @transform_8, window_bounds = array<i64: 1, 128>}, {transform_indices = @transform_9, window_bounds = array<i64: 8, 128>}]} {
    %c0 = arith.constant 0 : index
    %c0_0 = arith.constant 0 : index
    %0 = vector.load %arg1[%c0, %c0_0] : memref<8x420xbf16, #tpu.memory_space<vmem>>, vector<8x420xbf16>
    %c0_1 = arith.constant 0 : index
    %c0_2 = arith.constant 0 : index
    %1 = vector.load %arg2[%c0_1, %c0_2] : memref<420x256xbf16, #tpu.memory_space<vmem>>, vector<420x256xbf16>
    %cst = arith.constant dense<0.000000e+00> : vector<8x256xf32>
    %2 = tpu.matmul %0, %1, %cst {dimension_numbers = #tpu.dot_dimension_numbers<[1], [0], [0], [1], [0, 0, 1, 1], [], []>} : vector<8x420xbf16>, vector<420x256xbf16>, vector<8x256xf32> -> vector<8x256xf32>
    %c0_3 = arith.constant 0 : index
    %c0_4 = arith.constant 0 : index
    %3 = vector.load %arg3[%c0_3, %c0_4] : memref<1x256xf32, #tpu.memory_space<vmem>>, vector<1x256xf32>
    %4 = vector.broadcast %3 : vector<1x256xf32> to vector<8x256xf32>
    %5 = arith.addf %2, %4 : vector<8x256xf32>
    %cst_5 = arith.constant 0.000000e+00 : f32
    %6 = vector.broadcast %cst_5 : f32 to vector<8x256xf32>
    %7 = arith.maximumf %5, %6 : vector<8x256xf32>
    %8 = arith.truncf %7 : vector<8x256xf32> to vector<8x256xbf16>
    %c0_6 = arith.constant 0 : index
    %c0_7 = arith.constant 0 : index
    %9 = vector.load %arg4[%c0_6, %c0_7] : memref<256x128xbf16, #tpu.memory_space<vmem>>, vector<256x128xbf16>
    %cst_8 = arith.constant dense<0.000000e+00> : vector<8x128xf32>
    %10 = tpu.matmul %8, %9, %cst_8 {dimension_numbers = #tpu.dot_dimension_numbers<[1], [0], [0], [1], [0, 0, 1, 1], [], []>} : vector<8x256xbf16>, vector<256x128xbf16>, vector<8x128xf32> -> vector<8x128xf32>
    %c0_9 = arith.constant 0 : index
    %c0_10 = arith.constant 0 : index
    %11 = vector.load %arg5[%c0_9, %c0_10] : memref<1x128xf32, #tpu.memory_space<vmem>>, vector<1x128xf32>
    %12 = vector.broadcast %11 : vector<1x128xf32> to vector<8x128xf32>
    %13 = arith.addf %10, %12 : vector<8x128xf32>
    %cst_11 = arith.constant 0.000000e+00 : f32
    %14 = vector.broadcast %cst_11 : f32 to vector<8x128xf32>
    %15 = arith.maximumf %13, %14 : vector<8x128xf32>
    %16 = arith.truncf %15 : vector<8x128xf32> to vector<8x128xbf16>
    %c0_12 = arith.constant 0 : index
    %c0_13 = arith.constant 0 : index
    %17 = vector.load %arg6[%c0_12, %c0_13] : memref<128x64xbf16, #tpu.memory_space<vmem>>, vector<128x64xbf16>
    %cst_14 = arith.constant dense<0.000000e+00> : vector<8x64xf32>
    %18 = tpu.matmul %16, %17, %cst_14 {dimension_numbers = #tpu.dot_dimension_numbers<[1], [0], [0], [1], [0, 0, 1, 1], [], []>} : vector<8x128xbf16>, vector<128x64xbf16>, vector<8x64xf32> -> vector<8x64xf32>
    %c0_15 = arith.constant 0 : index
    %c0_16 = arith.constant 0 : index
    %19 = vector.load %arg7[%c0_15, %c0_16] : memref<1x64xf32, #tpu.memory_space<vmem>>, vector<1x64xf32>
    %20 = vector.broadcast %19 : vector<1x64xf32> to vector<8x64xf32>
    %21 = arith.addf %18, %20 : vector<8x64xf32>
    %cst_17 = arith.constant 0.000000e+00 : f32
    %22 = vector.broadcast %cst_17 : f32 to vector<8x64xf32>
    %23 = arith.maximumf %21, %22 : vector<8x64xf32>
    %24 = arith.truncf %23 : vector<8x64xf32> to vector<8x64xbf16>
    %c0_18 = arith.constant 0 : index
    %c0_19 = arith.constant 0 : index
    %25 = vector.load %arg8[%c0_18, %c0_19] : memref<64x128xbf16, #tpu.memory_space<vmem>>, vector<64x128xbf16>
    %cst_20 = arith.constant dense<0.000000e+00> : vector<8x128xf32>
    %26 = tpu.matmul %24, %25, %cst_20 {dimension_numbers = #tpu.dot_dimension_numbers<[1], [0], [0], [1], [0, 0, 1, 1], [], []>} : vector<8x64xbf16>, vector<64x128xbf16>, vector<8x128xf32> -> vector<8x128xf32>
    %c0_21 = arith.constant 0 : index
    %c0_22 = arith.constant 0 : index
    %27 = vector.load %arg9[%c0_21, %c0_22] : memref<1x128xf32, #tpu.memory_space<vmem>>, vector<1x128xf32>
    %28 = vector.broadcast %27 : vector<1x128xf32> to vector<8x128xf32>
    %29 = arith.addf %26, %28 : vector<8x128xf32>
    %cst_23 = arith.constant dense<0xFF800000> : vector<8xf32>
    %30 = vector.multi_reduction <maximumf>, %29, %cst_23 [1] : vector<8x128xf32> to vector<8xf32>
    %31 = vector.shape_cast %30 : vector<8xf32> to vector<8x1xf32>
    %32 = vector.broadcast %31 : vector<8x1xf32> to vector<8x128xf32>
    %33 = arith.subf %29, %32 : vector<8x128xf32>
    %34 = math.exp %33 : vector<8x128xf32>
    %cst_24 = arith.constant dense<0.000000e+00> : vector<8xf32>
    %35 = vector.multi_reduction <add>, %34, %cst_24 [1] : vector<8x128xf32> to vector<8xf32>
    %36 = vector.shape_cast %35 : vector<8xf32> to vector<8x1xf32>
    %37 = tpu.reciprocal %36 {approx = true} : vector<8x1xf32> -> vector<8x1xf32>
    %38 = vector.broadcast %37 : vector<8x1xf32> to vector<8x128xf32>
    %39 = arith.mulf %34, %38 : vector<8x128xf32>
    %c0_25 = arith.constant 0 : index
    %c0_26 = arith.constant 0 : index
    %40 = vector.load %arg10[%c0_25, %c0_26] : memref<8x128xf32, #tpu.memory_space<vmem>>, vector<8x128xf32>
    tpu.vector_store %arg10[%c0_25, %c0_26], %39 {strides = array<i32>} : memref<8x128xf32, #tpu.memory_space<vmem>>, vector<8x128xf32>,
    return
  }
  func.func @transform_0(%arg0: i32) -> (i32, i32) {
    %c0_i32 = arith.constant 0 : i32
    %c0_i32_0 = arith.constant 0 : i32
    return %arg0, %c0_i32 : i32, i32
  }
  func.func @transform_1(%arg0: i32) -> (i32, i32) {
    %c0_i32 = arith.constant 0 : i32
    %c0_i32_0 = arith.constant 0 : i32
    %c0_i32_1 = arith.constant 0 : i32
    return %c0_i32, %c0_i32_0 : i32, i32
  }
  func.func @transform_2(%arg0: i32) -> (i32, i32) {
    %c0_i32 = arith.constant 0 : i32
    %c0_i32_0 = arith.constant 0 : i32
    %c0_i32_1 = arith.constant 0 : i32
    return %c0_i32, %c0_i32_0 : i32, i32
  }
  func.func @transform_3(%arg0: i32) -> (i32, i32) {
    %c0_i32 = arith.constant 0 : i32
    %c0_i32_0 = arith.constant 0 : i32
    %c0_i32_1 = arith.constant 0 : i32
    return %c0_i32, %c0_i32_0 : i32, i32
  }
  func.func @transform_4(%arg0: i32) -> (i32, i32) {
    %c0_i32 = arith.constant 0 : i32
    %c0_i32_0 = arith.constant 0 : i32
    %c0_i32_1 = arith.constant 0 : i32
    return %c0_i32, %c0_i32_0 : i32, i32
  }
  func.func @transform_5(%arg0: i32) -> (i32, i32) {
    %c0_i32 = arith.constant 0 : i32
    %c0_i32_0 = arith.constant 0 : i32
    %c0_i32_1 = arith.constant 0 : i32
    return %c0_i32, %c0_i32_0 : i32, i32
  }
  func.func @transform_6(%arg0: i32) -> (i32, i32) {
    %c0_i32 = arith.constant 0 : i32
    %c0_i32_0 = arith.constant 0 : i32
    %c0_i32_1 = arith.constant 0 : i32
    return %c0_i32, %c0_i32_0 : i32, i32
  }
  func.func @transform_7(%arg0: i32) -> (i32, i32) {
    %c0_i32 = arith.constant 0 : i32
    %c0_i32_0 = arith.constant 0 : i32
    %c0_i32_1 = arith.constant 0 : i32
    return %c0_i32, %c0_i32_0 : i32, i32
  }
  func.func @transform_8(%arg0: i32) -> (i32, i32) {
    %c0_i32 = arith.constant 0 : i32
    %c0_i32_0 = arith.constant 0 : i32
    %c0_i32_1 = arith.constant 0 : i32
    return %c0_i32, %c0_i32_0 : i32, i32
  }
  func.func @transform_9(%arg0: i32) -> (i32, i32) {
    %c0_i32 = arith.constant 0 : i32
    %c0_i32_0 = arith.constant 0 : i32
    return %arg0, %c0_i32 : i32, i32
  }
}

</mosaic_0001>

<llo_original>
// kernel: tactical_agent_forward.1
$region0: #{tactical_agent_forward.1}
  #allocation0 [shape = 'u32[]', space=smem, size = 0x4, offset = 0x4, fixed_abs, tag = 'smem constant byte address 0x4 - core index']
  #allocation1 [shape = 'u32[144,128]{1,0:T(1,128)}', space=vmem, size = 0x12000, scoped, tag = 'internal scratch']
  %s0 = inlined_call_operand.vmem [shape: bf16[8,420], index: 0, kind: input, shape index: {}]
  %s1 = inlined_call_operand.hbm [shape: bf16[420,256], index: 1, kind: input, shape index: {}]
  %s2 = inlined_call_operand.vmem [shape: f32[1,256], index: 2, kind: input, shape index: {}]
  %s3 = inlined_call_operand.vmem [shape: bf16[256,128], index: 3, kind: input, shape index: {}]
  %s4 = inlined_call_operand.vmem [shape: f32[1,128], index: 4, kind: input, shape index: {}]
  %s5 = inlined_call_operand.vmem [shape: bf16[128,64], index: 5, kind: input, shape index: {}]
  %s6 = inlined_call_operand.vmem [shape: f32[1,64], index: 6, kind: input, shape index: {}]
  %s7 = inlined_call_operand.vmem [shape: bf16[64,128], index: 7, kind: input, shape index: {}]
  %s8 = inlined_call_operand.vmem [shape: f32[1,128], index: 8, kind: input, shape index: {}]
  %s9 = inlined_call_operand.vmem [shape: f32[8,128], index: 9, kind: output, shape index: {}]
  %s10 = sld [smem:[#allocation0]]
  $region50: #{tactical_agent_forward.1} parent=0
    _
  %s12 = ssub.s32 1, %s10
  %s13 = scalar_select 0, %s12, %s10
  $region1: #{tactical_agent_forward.1} parent=0
    #allocation2 [shape = 'u8[217088]{0}', space=vmem, size = 0x35000, scoped, tag = 'input window, operand 1, single buffered']
    #allocation3 [shape = 's32[1]{0}', space=sflag, size = 0x4, scoped, tag = 'scoped memory for tactical_agent_forward.1']
    %14 = vsyncpa [#allocation3], 0
    // Predicated region
    $region2: #{tactical_agent_forward.1} parent=1 // pred_check
      _
    $region3: #{tactical_agent_forward.1} parent=1 // pred_check_branch
      %16 = sbr.rel (0) target = $region5
    $region4: #{tactical_agent_forward.1} parent=1 // pred_region
      _
    $region5: #{tactical_agent_forward.1} parent=1 // pred_fallthru
      _
    // Predicated region
    $region6: #{tactical_agent_forward.1} parent=1 // pred_check
      _
    $region7: #{tactical_agent_forward.1} parent=1 // pred_check_branch
      %18 = sbr.rel (0) target = $region9
    $region8: #{tactical_agent_forward.1} parent=1 // pred_region
      %s20 = ssub.s32 6784, 6784
      %21 = vsyncadd [#allocation3], %s20
      %s22 = sshll.u32 [#allocation2], 4
      %s23 = int_to_ptr.vmem [resolvable:$true] %s22
      %28 = dma.hbm_to_vmem [thread:$0]  %s1, 6784, %s23, [#allocation3], 128, 128, 8
    $region9: #{tactical_agent_forward.1} parent=1 // pred_fallthru
      _
    // Predicated region
    $region10: #{tactical_agent_forward.1} parent=1 // pred_check
      _
    $region11: #{tactical_agent_forward.1} parent=1 // pred_check_branch
      %30 = sbr.rel (0) target = $region13
    $region12: #{tactical_agent_forward.1} parent=1 // pred_region
      _
    $region13: #{tactical_agent_forward.1} parent=1 // pred_fallthru
      _
    // Predicated region
    $region14: #{tactical_agent_forward.1} parent=1 // pred_check
      _
    $region15: #{tactical_agent_forward.1} parent=1 // pred_check_branch
      %32 = sbr.rel (0) target = $region17
    $region16: #{tactical_agent_forward.1} parent=1 // pred_region
      _
    $region17: #{tactical_agent_forward.1} parent=1 // pred_fallthru
      _
    // Predicated region
    $region18: #{tactical_agent_forward.1} parent=1 // pred_check
      _
    $region19: #{tactical_agent_forward.1} parent=1 // pred_check_branch
      %34 = sbr.rel (0) target = $region21
    $region20: #{tactical_agent_forward.1} parent=1 // pred_region
      _
    $region21: #{tactical_agent_forward.1} parent=1 // pred_fallthru
      _
    // Predicated region
    $region22: #{tactical_agent_forward.1} parent=1 // pred_check
      _
    $region23: #{tactical_agent_forward.1} parent=1 // pred_check_branch
      %36 = sbr.rel (0) target = $region25
    $region24: #{tactical_agent_forward.1} parent=1 // pred_region
      _
    $region25: #{tactical_agent_forward.1} parent=1 // pred_fallthru
      _
    // Predicated region
    $region26: #{tactical_agent_forward.1} parent=1 // pred_check
      _
    $region27: #{tactical_agent_forward.1} parent=1 // pred_check_branch
      %38 = sbr.rel (0) target = $region29
    $region28: #{tactical_agent_forward.1} parent=1 // pred_region
      _
    $region29: #{tactical_agent_forward.1} parent=1 // pred_fallthru
      _
    // Predicated region
    $region30: #{tactical_agent_forward.1} parent=1 // pred_check
      _
    $region31: #{tactical_agent_forward.1} parent=1 // pred_check_branch
      %40 = sbr.rel (0) target = $region33
    $region32: #{tactical_agent_forward.1} parent=1 // pred_region
      _
    $region33: #{tactical_agent_forward.1} parent=1 // pred_fallthru
      _
    // Predicated region
    $region34: #{tactical_agent_forward.1} parent=1 // pred_check
      _
    $region35: #{tactical_agent_forward.1} parent=1 // pred_check_branch
      %42 = sbr.rel (0) target = $region37
    $region36: #{tactical_agent_forward.1} parent=1 // pred_region
      _
    $region37: #{tactical_agent_forward.1} parent=1 // pred_fallthru
      _
    // Predicated region
    $region38: #{tactical_agent_forward.1} parent=1 // pred_check
      _
    $region39: #{tactical_agent_forward.1} parent=1 // pred_check_branch
      %44 = sbr.rel (0) target = $region41
    $region40: #{tactical_agent_forward.1} parent=1 // pred_region
      %45 = dma.done [#allocation3], 6784
    $region41: #{tactical_agent_forward.1} parent=1 // pred_fallthru
      _
    %v47 = vld [vmem:[%s0] sm:$0xff]
    %v48 = vld [vmem:[%s0 + $0x8] sm:$0xff]
    %v49 = vld [vmem:[#allocation2] sm:$0xff]
    %v50 = vld [vmem:[#allocation2 + $0x8] sm:$0xff]
    %v51 = vld [vmem:[#allocation2 + $0x10] sm:$0xff]
    %v52 = vld [vmem:[#allocation2 + $0x18] sm:$0xff]
    %v53 = vld [vmem:[#allocation2 + $0x20] sm:$0xff]
    %v54 = vld [vmem:[#allocation2 + $0x28] sm:$0xff]
    %v55 = vld [vmem:[#allocation2 + $0x30] sm:$0xff]
    %v56 = vld [vmem:[#allocation2 + $0x38] sm:$0xff]
    %v57 = vld [vmem:[#allocation2 + $0x40] sm:$0xff]
    %v58 = vld [vmem:[#allocation2 + $0x48] sm:$0xff]
    %v59 = vld [vmem:[#allocation2 + $0x50] sm:$0xff]
    %v60 = vld [vmem:[#allocation2 + $0x58] sm:$0xff]
    %v61 = vld [vmem:[#allocation2 + $0x60] sm:$0xff]
    %v62 = vld [vmem:[#allocation2 + $0x68] sm:$0xff]
    %v63 = vld [vmem:[#allocation2 + $0x70] sm:$0xff]
    %v64 = vld [vmem:[#allocation2 + $0x78] sm:$0xff]
    %v65 = vld [vmem:[#allocation2 + $0x80] sm:$0xff]
    %v66 = vld [vmem:[#allocation2 + $0x88] sm:$0xff]
    %v67 = vld [vmem:[#allocation2 + $0x90] sm:$0xff]
    %v68 = vld [vmem:[#allocation2 + $0x98] sm:$0xff]
    %v69 = vld [vmem:[#allocation2 + $0xa0] sm:$0xff]
    %v70 = vld [vmem:[#allocation2 + $0xa8] sm:$0xff]
    %v71 = vld [vmem:[#allocation2 + $0xb0] sm:$0xff]
    %v72 = vld [vmem:[#allocation2 + $0xb8] sm:$0xff]
    %v73 = vld [vmem:[#allocation2 + $0xc0] sm:$0xff]
    %v74 = vld [vmem:[#allocation2 + $0xc8] sm:$0xff]
    %v75 = vld [vmem:[#allocation2 + $0xd0] sm:$0xff]
    %v76 = vld [vmem:[#allocation2 + $0xd8] sm:$0xff]
    %v77 = vld [vmem:[#allocation2 + $0xe0] sm:$0xff]
    %v78 = vld [vmem:[#allocation2 + $0xe8] sm:$0xff]
    %v79 = vld [vmem:[#allocation2 + $0xf0] sm:$0xff]
    %v80 = vld [vmem:[#allocation2 + $0xf8] sm:$0xff]
    %v81 = vld [vmem:[#allocation2 + $0x100] sm:$0xff]
    %v82 = vld [vmem:[#allocation2 + $0x108] sm:$0xff]
    %v83 = vld [vmem:[#allocation2 + $0x110] sm:$0xff]
    %v84 = vld [vmem:[#allocation2 + $0x118] sm:$0xff]
    %v85 = vld [vmem:[#allocation2 + $0x120] sm:$0xff]
    %v86 = vld [vmem:[#allocation2 + $0x128] sm:$0xff]
    %v87 = vld [vmem:[#allocation2 + $0x130] sm:$0xff]
    %v88 = vld [vmem:[#allocation2 + $0x138] sm:$0xff]
    %v89 = vld [vmem:[#allocation2 + $0x140] sm:$0xff]
    %v90 = vld [vmem:[#allocation2 + $0x148] sm:$0xff]
    %v91 = vld [vmem:[#allocation2 + $0x150] sm:$0xff]
    %v92 = vld [vmem:[#allocation2 + $0x158] sm:$0xff]
    %v93 = vld [vmem:[#allocation2 + $0x160] sm:$0xff]
    %v94 = vld [vmem:[#allocation2 + $0x168] sm:$0xff]
    %v95 = vld [vmem:[#allocation2 + $0x170] sm:$0xff]
    %v96 = vld [vmem:[#allocation2 + $0x178] sm:$0xff]
    %v97 = vld [vmem:[#allocation2 + $0x180] sm:$0xff]
    %v98 = vld [vmem:[#allocation2 + $0x188] sm:$0xff]
    %v99 = vld [vmem:[#allocation2 + $0x190] sm:$0xff]
    %v100 = vld [vmem:[#allocation2 + $0x198] sm:$0xff]
    %v101 = vld [vmem:[#allocation2 + $0x1a0] sm:$0x33]
    %v102 = vld [vmem:[%s2] sm:$0x3]
    %v104 = vlaneseq
    %v105 = vshrl.u32 %v104, 7
    %v106 = vsub.s32 0, %v105
    %v107 = vrot.slane %v102, %v106
    %v108 = vlaneseq
    %v109 = vshrl.u32 %v108, 7
    %v110 = vsub.s32 1, %v109
    %v111 = vrot.slane %v102, %v110
    %v116 = vunpack.c.l.b16 %v47
    %v117 = vunpack.c.h.b16 %v47
    %v118 = vunpack.c.l.b16 %v48
    %v119 = vunpack.c.h.b16 %v48
    %v120 = vpack.c.b16 %v116, %v116
    %v121 = vpack.c.b16 %v117, %v117
    %v122 = vpack.c.b16 %v118, %v118
    %v123 = vpack.c.b16 %v119, %v119
    %v180 = vunpack.c.l.b16 %v49
    %v181 = vunpack.c.h.b16 %v49
    %v182 = vunpack.c.l.b16 %v50
    %v183 = vunpack.c.h.b16 %v50
    %v184 = vunpack.c.l.b16 %v51
    %v185 = vunpack.c.h.b16 %v51
    %v186 = vunpack.c.l.b16 %v52
    %v187 = vunpack.c.h.b16 %v52
    %v188 = vunpack.c.l.b16 %v53
    %v189 = vunpack.c.h.b16 %v53
    %v190 = vunpack.c.l.b16 %v54
    %v191 = vunpack.c.h.b16 %v54
    %v192 = vunpack.c.l.b16 %v55
    %v193 = vunpack.c.h.b16 %v55
    %v194 = vunpack.c.l.b16 %v56
    %v195 = vunpack.c.h.b16 %v56
    %v196 = vunpack.c.l.b16 %v57
    %v197 = vunpack.c.h.b16 %v57
    %v198 = vunpack.c.l.b16 %v58
    %v199 = vunpack.c.h.b16 %v58
    %v200 = vunpack.c.l.b16 %v59
    %v201 = vunpack.c.h.b16 %v59
    %v202 = vunpack.c.l.b16 %v60
    %v203 = vunpack.c.h.b16 %v60
    %v204 = vunpack.c.l.b16 %v61
    %v205 = vunpack.c.h.b16 %v61
    %v206 = vunpack.c.l.b16 %v62
    %v207 = vunpack.c.h.b16 %v62
    %v208 = vunpack.c.l.b16 %v63
    %v209 = vunpack.c.h.b16 %v63
    %v210 = vunpack.c.l.b16 %v64
    %v211 = vunpack.c.h.b16 %v64
    %v212 = vunpack.c.l.b16 %v65
    %v213 = vunpack.c.h.b16 %v65
    %v214 = vunpack.c.l.b16 %v66
    %v215 = vunpack.c.h.b16 %v66
    %v216 = vunpack.c.l.b16 %v67
    %v217 = vunpack.c.h.b16 %v67
    %v218 = vunpack.c.l.b16 %v68
    %v219 = vunpack.c.h.b16 %v68
    %v220 = vunpack.c.l.b16 %v69
    %v221 = vunpack.c.h.b16 %v69
    %v222 = vunpack.c.l.b16 %v70
    %v223 = vunpack.c.h.b16 %v70
    %v224 = vunpack.c.l.b16 %v71
    %v225 = vunpack.c.h.b16 %v71
    %v226 = vunpack.c.l.b16 %v72
    %v227 = vunpack.c.h.b16 %v72
    %v228 = vunpack.c.l.b16 %v73
    %v229 = vunpack.c.h.b16 %v73
    %v230 = vunpack.c.l.b16 %v74
    %v231 = vunpack.c.h.b16 %v74
    %v232 = vunpack.c.l.b16 %v75
    %v233 = vunpack.c.h.b16 %v75
    %v234 = vunpack.c.l.b16 %v76
    %v235 = vunpack.c.h.b16 %v76
    %v236 = vunpack.c.l.b16 %v77
    %v237 = vunpack.c.h.b16 %v77
    %v238 = vunpack.c.l.b16 %v78
    %v239 = vunpack.c.h.b16 %v78
    %v240 = vunpack.c.l.b16 %v79
    %v241 = vunpack.c.h.b16 %v79
    %v242 = vunpack.c.l.b16 %v80
    %v243 = vunpack.c.h.b16 %v80
    %v244 = vunpack.c.l.b16 %v81
    %v245 = vunpack.c.h.b16 %v81
    %v246 = vunpack.c.l.b16 %v82
    %v247 = vunpack.c.h.b16 %v82
    %v248 = vunpack.c.l.b16 %v83
    %v249 = vunpack.c.h.b16 %v83
    %v250 = vunpack.c.l.b16 %v84
    %v251 = vunpack.c.h.b16 %v84
    %v252 = vunpack.c.l.b16 %v85
    %v253 = vunpack.c.h.b16 %v85
    %v254 = vunpack.c.l.b16 %v86
    %v255 = vunpack.c.h.b16 %v86
    %v256 = vunpack.c.l.b16 %v87
    %v257 = vunpack.c.h.b16 %v87
    %v258 = vunpack.c.l.b16 %v88
    %v259 = vunpack.c.h.b16 %v88
    %v260 = vunpack.c.l.b16 %v89
    %v261 = vunpack.c.h.b16 %v89
    %v262 = vunpack.c.l.b16 %v90
    %v263 = vunpack.c.h.b16 %v90
    %v264 = vunpack.c.l.b16 %v91
    %v265 = vunpack.c.h.b16 %v91
    %v266 = vunpack.c.l.b16 %v92
    %v267 = vunpack.c.h.b16 %v92
    %v268 = vunpack.c.l.b16 %v93
    %v269 = vunpack.c.h.b16 %v93
    %v270 = vunpack.c.l.b16 %v94
    %v271 = vunpack.c.h.b16 %v94
    %v272 = vunpack.c.l.b16 %v95
    %v273 = vunpack.c.h.b16 %v95
    %v274 = vunpack.c.l.b16 %v96
    %v275 = vunpack.c.h.b16 %v96
    %v276 = vunpack.c.l.b16 %v97
    %v277 = vunpack.c.h.b16 %v97
    %v278 = vunpack.c.l.b16 %v98
    %v279 = vunpack.c.h.b16 %v98
    %v280 = vunpack.c.l.b16 %v99
    %v281 = vunpack.c.h.b16 %v99
    %v282 = vunpack.c.l.b16 %v100
    %v283 = vunpack.c.h.b16 %v100
    %v284 = vunpack.c.l.b16 %v101
    %v285 = vunpack.c.h.b16 %v101
    %v286 = vpack.c.b16 %v182, %v180
    %v287 = vpack.c.b16 %v183, %v181
    %v288 = vpack.c.b16 %v186, %v184
    %v289 = vpack.c.b16 %v187, %v185
    %v290 = vpack.c.b16 %v190, %v188
    %v291 = vpack.c.b16 %v191, %v189
    %v292 = vpack.c.b16 %v194, %v192
    %v293 = vpack.c.b16 %v195, %v193
    %v294 = vpack.c.b16 %v198, %v196
    %v295 = vpack.c.b16 %v199, %v197
    %v296 = vpack.c.b16 %v202, %v200
    %v297 = vpack.c.b16 %v203, %v201
    %v298 = vpack.c.b16 %v206, %v204
    %v299 = vpack.c.b16 %v207, %v205
    %v300 = vpack.c.b16 %v210, %v208
    %v301 = vpack.c.b16 %v211, %v209
    %v302 = vpack.c.b16 %v214, %v212
    %v303 = vpack.c.b16 %v215, %v213
    %v304 = vpack.c.b16 %v218, %v216
    %v305 = vpack.c.b16 %v219, %v217
    %v306 = vpack.c.b16 %v222, %v220
    %v307 = vpack.c.b16 %v223, %v221
    %v308 = vpack.c.b16 %v226, %v224
    %v309 = vpack.c.b16 %v227, %v225
    %v310 = vpack.c.b16 %v230, %v228
    %v311 = vpack.c.b16 %v231, %v229
    %v312 = vpack.c.b16 %v234, %v232
    %v313 = vpack.c.b16 %v235, %v233
    %v314 = vpack.c.b16 %v238, %v236
    %v315 = vpack.c.b16 %v239, %v237
    %v316 = vpack.c.b16 %v242, %v240
    %v317 = vpack.c.b16 %v243, %v241
    %v318 = vpack.c.b16 %v246, %v244
    %v319 = vpack.c.b16 %v247, %v245
    %v320 = vpack.c.b16 %v250, %v248
    %v321 = vpack.c.b16 %v251, %v249
    %v322 = vpack.c.b16 %v254, %v252
    %v323 = vpack.c.b16 %v255, %v253
    %v324 = vpack.c.b16 %v258, %v256
    %v325 = vpack.c.b16 %v259, %v257
    %v326 = vpack.c.b16 %v262, %v260
    %v327 = vpack.c.b16 %v263, %v261
    %v328 = vpack.c.b16 %v266, %v264
    %v329 = vpack.c.b16 %v267, %v265
    %v330 = vpack.c.b16 %v270, %v268
    %v331 = vpack.c.b16 %v271, %v269
    %v332 = vpack.c.b16 %v274, %v272
    %v333 = vpack.c.b16 %v275, %v273
    %v334 = vpack.c.b16 %v278, %v276
    %v335 = vpack.c.b16 %v279, %v277
    %v336 = vpack.c.b16 %v282, %v280
    %v337 = vpack.c.b16 %v283, %v281
    %v338 = vpack.c.b16 %v284, %v284
    %v339 = vpack.c.b16 %v285, %v285
    %vm392 = vcmask 293888
    %v394 = vsel %vm392, %v123, 0
    %vm396 = vcmask 1041408
    %v398 = vsel %vm396, %v338, 0
    %v401 = vsel %vm396, %v339, 0
    %403 = vmatprep.subr.bf16.mxu0 %v301
    %404 = vmatpush1.bf16.msra.mxu0 %v300
    %405 = vmatprep.subr.bf16.mxu0 %v299
    %406 = vmatpush1.bf16.msra.mxu0 %v298
    %407 = vmatprep.subr.bf16.mxu0 %v297
    %408 = vmatpush1.bf16.msra.mxu0 %v296
    %409 = vmatprep.subr.bf16.mxu0 %v295
    %410 = vmatpush1.bf16.msra.mxu0 %v294
    %411 = vmatprep.subr.bf16.mxu0 %v293
    %412 = vmatpush1.bf16.msra.mxu0 %v292
    %413 = vmatprep.subr.bf16.mxu0 %v291
    %414 = vmatpush1.bf16.msra.mxu0 %v290
    %415 = vmatprep.subr.bf16.mxu0 %v289
    %416 = vmatpush1.bf16.msra.mxu0 %v288
    %417 = vmatprep.subr.bf16.mxu0 %v287
    %418 = vmatpush1.bf16.msra.mxu0 %v286
    %419 = vmatprep.subr.bf16.mxu0 %v317
    %420 = vmatpush2.bf16.msra.mxu0 %v316
    %421 = vmatprep.subr.bf16.mxu0 %v315
    %422 = vmatpush2.bf16.msra.mxu0 %v314
    %423 = vmatprep.subr.bf16.mxu0 %v313
    %424 = vmatpush2.bf16.msra.mxu0 %v312
    %425 = vmatprep.subr.bf16.mxu0 %v311
    %426 = vmatpush2.bf16.msra.mxu0 %v310
    %427 = vmatprep.subr.bf16.mxu0 %v309
    %428 = vmatpush2.bf16.msra.mxu0 %v308
    %429 = vmatprep.subr.bf16.mxu0 %v307
    %430 = vmatpush2.bf16.msra.mxu0 %v306
    %431 = vmatprep.subr.bf16.mxu0 %v305
    %432 = vmatpush2.bf16.msra.mxu0 %v304
    %433 = vmatprep.subr.bf16.mxu0 %v303
    %434 = vmatpush2.bf16.msra.mxu0 %v302
    %435 = vmatprep.mubr.bf16.mxu0 %v121
    %436 = vmatmul.mubr.bf16.gmra.mxu0 %v120
    %v437 = vpop.f32.mrf.mxu0
    %v438 = vadd.f32 %v107, %v437
    %v439 = vpop.f32.mrf.mxu0
    %v440 = vadd.f32 %v111, %v439
    %v441 = vpop.f32.mrf.mxu0
    %v442 = vpop.f32.mrf.mxu0
    %443 = vdwg.mxu0
    %444 = vmatprep.subr.bf16.mxu0 %v333
    %445 = vmatpush1.bf16.msra.mxu0 %v332
    %446 = vmatprep.subr.bf16.mxu0 %v331
    %447 = vmatpush1.bf16.msra.mxu0 %v330
    %448 = vmatprep.subr.bf16.mxu0 %v329
    %449 = vmatpush1.bf16.msra.mxu0 %v328
    %450 = vmatprep.subr.bf16.mxu0 %v327
    %451 = vmatpush1.bf16.msra.mxu0 %v326
    %452 = vmatprep.subr.bf16.mxu0 %v325
    %453 = vmatpush1.bf16.msra.mxu0 %v324
    %454 = vmatprep.subr.bf16.mxu0 %v323
    %455 = vmatpush1.bf16.msra.mxu0 %v322
    %456 = vmatprep.subr.bf16.mxu0 %v321
    %457 = vmatpush1.bf16.msra.mxu0 %v320
    %458 = vmatprep.subr.bf16.mxu0 %v319
    %459 = vmatpush1.bf16.msra.mxu0 %v318
    %460 = vmatprep.subr.bf16.mxu0 0
    %461 = vmatpush2.bf16.msra.mxu0 0
    %462 = vmatprep.subr.bf16.mxu0 0
    %463 = vmatpush2.bf16.msra.mxu0 0
    %464 = vmatprep.subr.bf16.mxu0 0
    %465 = vmatpush2.bf16.msra.mxu0 0
    %466 = vmatprep.subr.bf16.mxu0 0
    %467 = vmatpush2.bf16.msra.mxu0 0
    %468 = vmatprep.subr.bf16.mxu0 0
    %469 = vmatpush2.bf16.msra.mxu0 0
    %470 = vmatprep.subr.bf16.mxu0 %v401
    %471 = vmatpush2.bf16.msra.mxu0 %v398
    %472 = vmatprep.subr.bf16.mxu0 %v337
    %473 = vmatpush2.bf16.msra.mxu0 %v336
    %474 = vmatprep.subr.bf16.mxu0 %v335
    %475 = vmatpush2.bf16.msra.mxu0 %v334
    %476 = vmatprep.mubr.bf16.mxu0 %v394
    %477 = vmatmul.mubr.bf16.gmra.mxu0 %v122
    %v478 = vpop.f32.mrf.mxu0
    %v479 = vadd.f32 %v438, %v478
    %v480 = vpop.f32.mrf.mxu0
    %v481 = vadd.f32 %v440, %v480
    %v482 = vpop.f32.mrf.mxu0
    %v483 = vpop.f32.mrf.mxu0
    %484 = vdwg.mxu0
    %v485 = vmax.f32 %v479, 0.0
    %v486 = vmax.f32 %v481, 0.0
    %v487 = vpack.c.bf16 %v485, %v485
    %v488 = vpack.c.bf16 %v486, %v486
    %v489 = vld [vmem:[%s3] sm:$0xf]
    %v490 = vld [vmem:[%s3 + $0x4] sm:$0xf]
    %v491 = vld [vmem:[%s3 + $0x8] sm:$0xf]
    %v492 = vld [vmem:[%s3 + $0xc] sm:$0xf]
    %v493 = vld [vmem:[%s3 + $0x10] sm:$0xf]
    %v494 = vld [vmem:[%s3 + $0x14] sm:$0xf]
    %v495 = vld [vmem:[%s3 + $0x18] sm:$0xf]
    %v496 = vld [vmem:[%s3 + $0x1c] sm:$0xf]
    %v497 = vld [vmem:[%s3 + $0x20] sm:$0xf]
    %v498 = vld [vmem:[%s3 + $0x24] sm:$0xf]
    %v499 = vld [vmem:[%s3 + $0x28] sm:$0xf]
    %v500 = vld [vmem:[%s3 + $0x2c] sm:$0xf]
    %v501 = vld [vmem:[%s3 + $0x30] sm:$0xf]
    %v502 = vld [vmem:[%s3 + $0x34] sm:$0xf]
    %v503 = vld [vmem:[%s3 + $0x38] sm:$0xf]
    %v504 = vld [vmem:[%s3 + $0x3c] sm:$0xf]
    %v505 = vld [vmem:[%s3 + $0x40] sm:$0xf]
    %v506 = vld [vmem:[%s3 + $0x44] sm:$0xf]
    %v507 = vld [vmem:[%s3 + $0x48] sm:$0xf]
    %v508 = vld [vmem:[%s3 + $0x4c] sm:$0xf]
    %v509 = vld [vmem:[%s3 + $0x50] sm:$0xf]
    %v510 = vld [vmem:[%s3 + $0x54] sm:$0xf]
    %v511 = vld [vmem:[%s3 + $0x58] sm:$0xf]
    %v512 = vld [vmem:[%s3 + $0x5c] sm:$0xf]
    %v513 = vld [vmem:[%s3 + $0x60] sm:$0xf]
    %v514 = vld [vmem:[%s3 + $0x64] sm:$0xf]
    %v515 = vld [vmem:[%s3 + $0x68] sm:$0xf]
    %v516 = vld [vmem:[%s3 + $0x6c] sm:$0xf]
    %v517 = vld [vmem:[%s3 + $0x70] sm:$0xf]
    %v518 = vld [vmem:[%s3 + $0x74] sm:$0xf]
    %v519 = vld [vmem:[%s3 + $0x78] sm:$0xf]
    %v520 = vld [vmem:[%s3 + $0x7c] sm:$0xf]
    %v521 = vld [vmem:[%s4] sm:$0x1]
    %v523 = vlaneseq
    %v524 = vshrl.u32 %v523, 7
    %v525 = vsub.s32 0, %v524
    %v526 = vrot.slane %v521, %v525
    %v560 = vunpack.c.l.b16 %v489
    %v561 = vunpack.c.l.b16 %v490
    %v562 = vunpack.c.l.b16 %v491
    %v563 = vunpack.c.l.b16 %v492
    %v564 = vunpack.c.l.b16 %v493
    %v565 = vunpack.c.l.b16 %v494
    %v566 = vunpack.c.l.b16 %v495
    %v567 = vunpack.c.l.b16 %v496
    %v568 = vunpack.c.l.b16 %v497
    %v569 = vunpack.c.l.b16 %v498
    %v570 = vunpack.c.l.b16 %v499
    %v571 = vunpack.c.l.b16 %v500
    %v572 = vunpack.c.l.b16 %v501
    %v573 = vunpack.c.l.b16 %v502
    %v574 = vunpack.c.l.b16 %v503
    %v575 = vunpack.c.l.b16 %v504
    %v576 = vunpack.c.l.b16 %v505
    %v577 = vunpack.c.l.b16 %v506
    %v578 = vunpack.c.l.b16 %v507
    %v579 = vunpack.c.l.b16 %v508
    %v580 = vunpack.c.l.b16 %v509
    %v581 = vunpack.c.l.b16 %v510
    %v582 = vunpack.c.l.b16 %v511
    %v583 = vunpack.c.l.b16 %v512
    %v584 = vunpack.c.l.b16 %v513
    %v585 = vunpack.c.l.b16 %v514
    %v586 = vunpack.c.l.b16 %v515
    %v587 = vunpack.c.l.b16 %v516
    %v588 = vunpack.c.l.b16 %v517
    %v589 = vunpack.c.l.b16 %v518
    %v590 = vunpack.c.l.b16 %v519
    %v591 = vunpack.c.l.b16 %v520
    %v592 = vpack.c.b16 %v561, %v560
    %v593 = vpack.c.b16 %v563, %v562
    %v594 = vpack.c.b16 %v565, %v564
    %v595 = vpack.c.b16 %v567, %v566
    %v596 = vpack.c.b16 %v569, %v568
    %v597 = vpack.c.b16 %v571, %v570
    %v598 = vpack.c.b16 %v573, %v572
    %v599 = vpack.c.b16 %v575, %v574
    %v600 = vpack.c.b16 %v577, %v576
    %v601 = vpack.c.b16 %v579, %v578
    %v602 = vpack.c.b16 %v581, %v580
    %v603 = vpack.c.b16 %v583, %v582
    %v604 = vpack.c.b16 %v585, %v584
    %v605 = vpack.c.b16 %v587, %v586
    %v606 = vpack.c.b16 %v589, %v588
    %v607 = vpack.c.b16 %v591, %v590
    %624 = vmatprep.subr.bf16.mxu0 0
    %625 = vmatpush1.bf16.msra.mxu0 %v599
    %626 = vmatprep.subr.bf16.mxu0 0
    %627 = vmatpush1.bf16.msra.mxu0 %v598
    %628 = vmatprep.subr.bf16.mxu0 0
    %629 = vmatpush1.bf16.msra.mxu0 %v597
    %630 = vmatprep.subr.bf16.mxu0 0
    %631 = vmatpush1.bf16.msra.mxu0 %v596
    %632 = vmatprep.subr.bf16.mxu0 0
    %633 = vmatpush1.bf16.msra.mxu0 %v595
    %634 = vmatprep.subr.bf16.mxu0 0
    %635 = vmatpush1.bf16.msra.mxu0 %v594
    %636 = vmatprep.subr.bf16.mxu0 0
    %637 = vmatpush1.bf16.msra.mxu0 %v593
    %638 = vmatprep.subr.bf16.mxu0 0
    %639 = vmatpush1.bf16.msra.mxu0 %v592
    %640 = vmatprep.subr.bf16.mxu0 0
    %641 = vmatpush2.bf16.msra.mxu0 %v607
    %642 = vmatprep.subr.bf16.mxu0 0
    %643 = vmatpush2.bf16.msra.mxu0 %v606
    %644 = vmatprep.subr.bf16.mxu0 0
    %645 = vmatpush2.bf16.msra.mxu0 %v605
    %646 = vmatprep.subr.bf16.mxu0 0
    %647 = vmatpush2.bf16.msra.mxu0 %v604
    %648 = vmatprep.subr.bf16.mxu0 0
    %649 = vmatpush2.bf16.msra.mxu0 %v603
    %650 = vmatprep.subr.bf16.mxu0 0
    %651 = vmatpush2.bf16.msra.mxu0 %v602
    %652 = vmatprep.subr.bf16.mxu0 0
    %653 = vmatpush2.bf16.msra.mxu0 %v601
    %654 = vmatprep.subr.bf16.mxu0 0
    %655 = vmatpush2.bf16.msra.mxu0 %v600
    %656 = vmatprep.mubr.bf16.mxu0 %v488
    %657 = vmatmul.mubr.bf16.gmra.mxu0 %v487
    %v658 = vpop.f32.mrf.mxu0
    %v659 = vadd.f32 %v526, %v658
    %v660 = vpop.f32.mrf.mxu0
    %v661 = vpop.f32.mrf.mxu0
    %v662 = vpop.f32.mrf.mxu0
    %663 = vdwg.mxu0
    %v664 = vmax.f32 %v659, 0.0
    %v665 = vpack.c.bf16 %v664, %v664
    %v666 = vld [vmem:[%s5] sm:$0xf]
    %v667 = vld [vmem:[%s5 + $0x4] sm:$0xf]
    %v668 = vld [vmem:[%s5 + $0x8] sm:$0xf]
    %v669 = vld [vmem:[%s5 + $0xc] sm:$0xf]
    %v670 = vld [vmem:[%s5 + $0x10] sm:$0xf]
    %v671 = vld [vmem:[%s5 + $0x14] sm:$0xf]
    %v672 = vld [vmem:[%s5 + $0x18] sm:$0xf]
    %v673 = vld [vmem:[%s5 + $0x1c] sm:$0xf]
    %v674 = vld [vmem:[%s5 + $0x20] sm:$0xf]
    %v675 = vld [vmem:[%s5 + $0x24] sm:$0xf]
    %v676 = vld [vmem:[%s5 + $0x28] sm:$0xf]
    %v677 = vld [vmem:[%s5 + $0x2c] sm:$0xf]
    %v678 = vld [vmem:[%s5 + $0x30] sm:$0xf]
    %v679 = vld [vmem:[%s5 + $0x34] sm:$0xf]
    %v680 = vld [vmem:[%s5 + $0x38] sm:$0xf]
    %v681 = vld [vmem:[%s5 + $0x3c] sm:$0xf]
    %v682 = vld [vmem:[%s6] sm:$0x1]
    %v684 = vlaneseq
    %v685 = vshrl.u32 %v684, 7
    %v686 = vsub.s32 0, %v685
    %v687 = vrot.slane %v682, %v686
    %v705 = vunpack.c.l.b16 %v666
    %v706 = vunpack.c.l.b16 %v667
    %v707 = vunpack.c.l.b16 %v668
    %v708 = vunpack.c.l.b16 %v669
    %v709 = vunpack.c.l.b16 %v670
    %v710 = vunpack.c.l.b16 %v671
    %v711 = vunpack.c.l.b16 %v672
    %v712 = vunpack.c.l.b16 %v673
    %v713 = vunpack.c.l.b16 %v674
    %v714 = vunpack.c.l.b16 %v675
    %v715 = vunpack.c.l.b16 %v676
    %v716 = vunpack.c.l.b16 %v677
    %v717 = vunpack.c.l.b16 %v678
    %v718 = vunpack.c.l.b16 %v679
    %v719 = vunpack.c.l.b16 %v680
    %v720 = vunpack.c.l.b16 %v681
    %v721 = vpack.c.b16 %v706, %v705
    %v722 = vpack.c.b16 %v708, %v707
    %v723 = vpack.c.b16 %v710, %v709
    %v724 = vpack.c.b16 %v712, %v711
    %v725 = vpack.c.b16 %v714, %v713
    %v726 = vpack.c.b16 %v716, %v715
    %v727 = vpack.c.b16 %v718, %v717
    %v728 = vpack.c.b16 %v720, %v719
    %737 = vmatprep.subr.bf16.mxu0 0
    %738 = vmatpush1.bf16.msra.mxu0 %v728
    %739 = vmatprep.subr.bf16.mxu0 0
    %740 = vmatpush1.bf16.msra.mxu0 %v727
    %741 = vmatprep.subr.bf16.mxu0 0
    %742 = vmatpush1.bf16.msra.mxu0 %v726
    %743 = vmatprep.subr.bf16.mxu0 0
    %744 = vmatpush1.bf16.msra.mxu0 %v725
    %745 = vmatprep.subr.bf16.mxu0 0
    %746 = vmatpush1.bf16.msra.mxu0 %v724
    %747 = vmatprep.subr.bf16.mxu0 0
    %748 = vmatpush1.bf16.msra.mxu0 %v723
    %749 = vmatprep.subr.bf16.mxu0 0
    %750 = vmatpush1.bf16.msra.mxu0 %v722
    %751 = vmatprep.subr.bf16.mxu0 0
    %752 = vmatpush1.bf16.msra.mxu0 %v721
    %753 = vmatprep.subr.bf16.mxu0 0
    %754 = vmatpush2.bf16.msra.mxu0 0
    %755 = vmatprep.subr.bf16.mxu0 0
    %756 = vmatpush2.bf16.msra.mxu0 0
    %757 = vmatprep.subr.bf16.mxu0 0
    %758 = vmatpush2.bf16.msra.mxu0 0
    %759 = vmatprep.subr.bf16.mxu0 0
    %760 = vmatpush2.bf16.msra.mxu0 0
    %761 = vmatprep.subr.bf16.mxu0 0
    %762 = vmatpush2.bf16.msra.mxu0 0
    %763 = vmatprep.subr.bf16.mxu0 0
    %764 = vmatpush2.bf16.msra.mxu0 0
    %765 = vmatprep.subr.bf16.mxu0 0
    %766 = vmatpush2.bf16.msra.mxu0 0
    %767 = vmatprep.subr.bf16.mxu0 0
    %768 = vmatpush2.bf16.msra.mxu0 0
    %769 = vmatprep.mubr.bf16.mxu0 0
    %770 = vmatmul.mubr.bf16.gmra.mxu0 %v665
    %v771 = vpop.f32.mrf.mxu0
    %v772 = vadd.f32 %v687, %v771
    %v773 = vpop.f32.mrf.mxu0
    %v774 = vpop.f32.mrf.mxu0
    %v775 = vpop.f32.mrf.mxu0
    %776 = vdwg.mxu0
    %v777 = vmax.f32 %v772, 0.0
    %v778 = vpack.c.bf16 %v777, %v777
    %v779 = vld [vmem:[%s7] sm:$0xf]
    %v780 = vld [vmem:[%s7 + $0x4] sm:$0xf]
    %v781 = vld [vmem:[%s7 + $0x8] sm:$0xf]
    %v782 = vld [vmem:[%s7 + $0xc] sm:$0xf]
    %v783 = vld [vmem:[%s7 + $0x10] sm:$0xf]
    %v784 = vld [vmem:[%s7 + $0x14] sm:$0xf]
    %v785 = vld [vmem:[%s7 + $0x18] sm:$0xf]
    %v786 = vld [vmem:[%s7 + $0x1c] sm:$0xf]
    %v787 = vld [vmem:[%s8] sm:$0x1]
    %v789 = vlaneseq
    %v790 = vshrl.u32 %v789, 7
    %v791 = vsub.s32 0, %v790
    %v792 = vrot.slane %v787, %v791
    %v802 = vunpack.c.l.b16 %v779
    %v803 = vunpack.c.l.b16 %v780
    %v804 = vunpack.c.l.b16 %v781
    %v805 = vunpack.c.l.b16 %v782
    %v806 = vunpack.c.l.b16 %v783
    %v807 = vunpack.c.l.b16 %v784
    %v808 = vunpack.c.l.b16 %v785
    %v809 = vunpack.c.l.b16 %v786
    %v810 = vpack.c.b16 %v803, %v802
    %v811 = vpack.c.b16 %v805, %v804
    %v812 = vpack.c.b16 %v807, %v806
    %v813 = vpack.c.b16 %v809, %v808
    %vm818 = vcmask 523264
    %v820 = vsel %vm818, %v778, 0
    %822 = vmatprep.subr.bf16.mxu0 0
    %823 = vmatpush1.bf16.msra.mxu0 0
    %824 = vmatprep.subr.bf16.mxu0 0
    %825 = vmatpush1.bf16.msra.mxu0 0
    %826 = vmatprep.subr.bf16.mxu0 0
    %827 = vmatpush1.bf16.msra.mxu0 0
    %828 = vmatprep.subr.bf16.mxu0 0
    %829 = vmatpush1.bf16.msra.mxu0 0
    %830 = vmatprep.subr.bf16.mxu0 0
    %831 = vmatpush1.bf16.msra.mxu0 %v813
    %832 = vmatprep.subr.bf16.mxu0 0
    %833 = vmatpush1.bf16.msra.mxu0 %v812
    %834 = vmatprep.subr.bf16.mxu0 0
    %835 = vmatpush1.bf16.msra.mxu0 %v811
    %836 = vmatprep.subr.bf16.mxu0 0
    %837 = vmatpush1.bf16.msra.mxu0 %v810
    %838 = vmatprep.subr.bf16.mxu0 0
    %839 = vmatpush2.bf16.msra.mxu0 0
    %840 = vmatprep.subr.bf16.mxu0 0
    %841 = vmatpush2.bf16.msra.mxu0 0
    %842 = vmatprep.subr.bf16.mxu0 0
    %843 = vmatpush2.bf16.msra.mxu0 0
    %844 = vmatprep.subr.bf16.mxu0 0
    %845 = vmatpush2.bf16.msra.mxu0 0
    %846 = vmatprep.subr.bf16.mxu0 0
    %847 = vmatpush2.bf16.msra.mxu0 0
    %848 = vmatprep.subr.bf16.mxu0 0
    %849 = vmatpush2.bf16.msra.mxu0 0
    %850 = vmatprep.subr.bf16.mxu0 0
    %851 = vmatpush2.bf16.msra.mxu0 0
    %852 = vmatprep.subr.bf16.mxu0 0
    %853 = vmatpush2.bf16.msra.mxu0 0
    %854 = vmatprep.mubr.bf16.mxu0 0
    %855 = vmatmul.mubr.bf16.gmra.mxu0 %v820
    %v856 = vpop.f32.mrf.mxu0
    %v857 = vadd.f32 %v792, %v856
    %v858 = vpop.f32.mrf.mxu0
    %v859 = vpop.f32.mrf.mxu0
    %v860 = vpop.f32.mrf.mxu0
    %861 = vdwg.mxu0
    %862 = vmax.xlane.f32.xlu0 %v857
    %v863 = vpop.xlane.xlu0 %862
    %v864 = vsub.f32 %v857, %v863
    %v865 = vmul.f32 %v864, 1.442695
    %v866 = vpow.pop %v865
    %867 = vadd.xlane.f32.xlu0 %v866
    %v868 = vpop.xlane.xlu0 %867
    %v869 = vrcp.pop %v868
    %v870 = vmul.f32 %v866, %v869
    %871 = vst [vmem:[%s9] sm:$0xff] %v870
    // Predicated region
    $region42: #{tactical_agent_forward.1} parent=1 // pred_check
      _
    $region43: #{tactical_agent_forward.1} parent=1 // pred_check_branch
      %873 = sbr.rel (0) target = $region45
    $region44: #{tactical_agent_forward.1} parent=1 // pred_region
      _
    $region45: #{tactical_agent_forward.1} parent=1 // pred_fallthru
      _
    // Predicated region
    $region46: #{tactical_agent_forward.1} parent=1 // pred_check
      _
    $region47: #{tactical_agent_forward.1} parent=1 // pred_check_branch
      %875 = sbr.rel (0) target = $region49
    $region48: #{tactical_agent_forward.1} parent=1 // pred_region
      _
    $region49: #{tactical_agent_forward.1} parent=1 // pred_fallthru
      _
    %876 = vsyncpa [#allocation3], 1

</llo_original>
